<compile_context>
chip_gen: v7x
topology: tpu7x:2x2x1
jax: 0.10.0
libtpu: 0.0.40
codegen_flags: <defaults>
</compile_context>

<pallas_src>
from typing import NamedTuple

import numpy as np

import jax
import jax.numpy as jnp
from jax.experimental import pallas as pl
from jax.experimental.pallas import tpu as pltpu


def _round_up(x, m):
    return ((x + m - 1) // m) * m


def _cdiv(a, b):
    return -(-a // b)


def _physical_vmem_bytes():
    """Best-effort per-core VMEM capacity; conservative fallback (v7x = 64 MiB)."""
    try:
        info = pltpu.get_tpu_info()
        phys = int(getattr(info, "vmem_capacity_bytes", 0))
        if phys > 0:
            return phys
    except Exception:
        pass
    return 64 * 1024 * 1024


class SpectralPlan(NamedTuple):
    B: int
    Ci: int
    Co: int
    N: int
    M: int
    Bp: int
    Kp: int
    Np: int
    tile_m: int
    Mp: int
    n_steps: int
    vmem_limit_bytes: int
    dtype: object


def plan_spectral_conv1d(batch, in_channels, out_channels, n, modes1,
                         compute_dtype=jnp.bfloat16):
    """Static tiling plan (run once per shape/config; Python ints only)."""
    assert modes1 <= n // 2 + 1, (
        f"modes1={modes1} must be <= n//2+1={n // 2 + 1}")
    B, Ci, Co, M = batch, in_channels, out_channels, modes1
    itemsize = np.dtype(compute_dtype).itemsize
    pack = max(8, 32 // itemsize)          # sublane pack: 8 (f32) / 16 (bf16)

    Bp = _round_up(B, pack)
    Kp = _round_up(2 * Ci, pack)           # no 128-pad: block covers full dim
    Np = _round_up(2 * Co, 128)            # lane-dense stores

    # Double-buffered per-mode VMEM footprint (x, w in compute dtype; out f32).
    per_mode_bytes = 2 * (Bp * Kp * itemsize + Kp * Np * itemsize + Bp * Np * 4)

    phys = _physical_vmem_bytes()
    budget = phys // 2                     # ~32 MiB v7x, ~64 MiB v5e/v6e
    tile_m_max = max(1, budget // per_mode_bytes)

    n_steps = max(1, _cdiv(M, tile_m_max))
    if M >= 2:
        n_steps = max(n_steps, 2)          # >=2 steps: megacore + DMA overlap
        if n_steps % 2 == 1 and n_steps < M:
            n_steps += 1                   # prefer an even step count on v7x
    tile_m = _cdiv(M, n_steps)
    Mp = tile_m * n_steps

    working_set = tile_m * per_mode_bytes
    vmem_limit = int(min(phys * 0.85, max(working_set + (4 << 20), 32 << 20)))

    return SpectralPlan(B=B, Ci=Ci, Co=Co, N=n, M=M, Bp=Bp, Kp=Kp, Np=Np,
                        tile_m=tile_m, Mp=Mp, n_steps=n_steps,
                        vmem_limit_bytes=vmem_limit, dtype=compute_dtype)


def prepare_block_weights(weights1, plan):
    """Build the (Mp, Kp, Np) block-real weight ONCE (hoist out of the forward).

    weights1 : (C_in, C_out, modes1) complex64
    """
    Ci, Co, M = plan.Ci, plan.Co, plan.M
    w = jnp.transpose(weights1[:, :, :M], (2, 0, 1))              # (M, Ci, Co)
    wr = jnp.real(w).astype(jnp.float32)
    wi = jnp.imag(w).astype(jnp.float32)
    top = jnp.concatenate([wr, wi], axis=-1)                      # (M, Ci, 2Co)
    bot = jnp.concatenate([-wi, wr], axis=-1)                     # (M, Ci, 2Co)
    w_blk = jnp.concatenate([top, bot], axis=1)                   # (M, 2Ci, 2Co)
    w_blk = jnp.pad(w_blk, ((0, plan.Mp - M),
                            (0, plan.Kp - 2 * Ci),
                            (0, plan.Np - 2 * Co)))
    return w_blk.astype(plan.dtype)                               # (Mp, Kp, Np)


def _spectral_mix_kernel(x_ref, w_ref, o_ref):
    """Block-real complex mixing for a tile of Fourier modes.

    x_ref : (TM, Bp, Kp) compute dtype, rows = [Re(x_ft) | Im(x_ft)] (+ zero pad)
    w_ref : (TM, Kp, Np) compute dtype, block weight [[Wr, Wi], [-Wi, Wr]] (+ pad)
    o_ref : (TM, Bp, Np) float32,       cols = [Re(out) | Im(out)] (+ zero pad)
    """
    o_ref[...] = jnp.einsum(
        "mbk,mkn->mbn", x_ref[...], w_ref[...],
        preferred_element_type=jnp.float32)


def _spectral_mix(x_blk, w_blk, plan):
    """Tiled per-mode block-real mixing on the MXU.

    x_blk : (Mp, Bp, Kp) compute dtype
    w_blk : (Mp, Kp, Np) compute dtype
    returns (Mp, Bp, Np) float32
    """
    Mp, Bp, Kp = x_blk.shape
    Np = w_blk.shape[-1]
    tm = plan.tile_m
    assert Mp % tm == 0

    flops = 2 * Mp * Bp * Kp * Np
    bytes_accessed = (x_blk.size * x_blk.dtype.itemsize
                      + w_blk.size * w_blk.dtype.itemsize
                      + Mp * Bp * Np * 4)

    # TODO(synk): with many grid steps, sweep pipeline_mode=pl.Buffered(3) on
    # the weight BlockSpec to hide sub-microsecond DMA jitter.
    return pl.pallas_call(
        _spectral_mix_kernel,
        out_shape=jax.ShapeDtypeStruct((Mp, Bp, Np), jnp.float32),
        grid=(Mp // tm,),
        in_specs=[
            pl.BlockSpec((tm, Bp, Kp), lambda m: (m, 0, 0)),
            pl.BlockSpec((tm, Kp, Np), lambda m: (m, 0, 0)),
        ],
        out_specs=pl.BlockSpec((tm, Bp, Np), lambda m: (m, 0, 0)),
        compiler_params=pltpu.CompilerParams(
            dimension_semantics=("parallel",),          # shard modes over TCs
            vmem_limit_bytes=plan.vmem_limit_bytes),
        cost_estimate=pl.CostEstimate(
            flops=flops, transcendentals=0, bytes_accessed=bytes_accessed),
    )(x_blk, w_blk)


def make_spectral_conv1d(plan):
    """Return a jittable forward: (x, w_blk) -> y.

    x     : (B, C_in, N)   float32
    w_blk : (Mp, Kp, Np)   precomputed via prepare_block_weights()
    y     : (B, C_out, N)  float32
    """
    M, Co = plan.M, plan.Co

    def forward(x, w_blk):
        B, Ci, N = x.shape
        n_freq = N // 2 + 1

        # TODO(synk): rfft/irfft have no Pallas TPU primitive; kept in XLA.
        x_ft = jnp.fft.rfft(x.astype(jnp.float32), axis=-1)      # (B, Ci, n_freq)

        # Mode-major real/imag concat, cast to compute dtype BEFORE padding.
        xm = jnp.transpose(x_ft[:, :, :M], (2, 0, 1))             # (M, B, Ci)
        x_cat = jnp.concatenate(
            [jnp.real(xm), jnp.imag(xm)], axis=-1).astype(plan.dtype)
        x_blk = jnp.pad(x_cat, ((0, plan.Mp - M),
                                (0, plan.Bp - B),
                                (0, plan.Kp - 2 * Ci)))           # (Mp, Bp, Kp)

        # Hot path: block-real per-mode mixing on the MXU.
        out = _spectral_mix(x_blk, w_blk, plan)                   # (Mp, Bp, Np)

        out_r = out[:M, :B, :Co]
        out_i = out[:M, :B, Co:2 * Co]
        out_modes = (out_r + 1j * out_i).astype(jnp.complex64)    # (M, B, Co)
        out_modes = jnp.transpose(out_modes, (1, 2, 0))           # (B, Co, M)

        # Zero-pad remaining frequencies (pad fuses better than zeros+scatter).
        out_ft = jnp.pad(out_modes, ((0, 0), (0, 0), (0, n_freq - M)))
        y = jnp.fft.irfft(out_ft, n=N, axis=-1)                   # (B, Co, N)
        return y.astype(jnp.float32)

    return forward


def init_weights(key, in_channels, out_channels, modes1):
    """Deterministic init mirroring torch.rand(..., dtype=cfloat) * scale."""
    scale = 1.0 / (in_channels * out_channels)
    k_r, k_i = jax.random.split(key)
    wr = jax.random.uniform(k_r, (in_channels, out_channels, modes1), jnp.float32)
    wi = jax.random.uniform(k_i, (in_channels, out_channels, modes1), jnp.float32)
    return (scale * (wr + 1j * wi)).astype(jnp.complex64)


if __name__ == "__main__":
    # Small deterministic example shapes.
    B, C_in, C_out, N, modes1 = 2, 4, 4, 16, 5

    key = jax.random.PRNGKey(0)
    k_x, k_w = jax.random.split(key)
    x = jax.random.normal(k_x, (B, C_in, N), dtype=jnp.float32)
    weights1 = init_weights(k_w, C_in, C_out, modes1)

    # bf16 compute path: plan + block weights built ONCE outside the jit.
    plan_bf16 = plan_spectral_conv1d(B, C_in, C_out, N, modes1, jnp.bfloat16)
    w_blk_bf16 = jax.block_until_ready(prepare_block_weights(weights1, plan_bf16))
    fwd_bf16 = jax.jit(make_spectral_conv1d(plan_bf16))
    out = jax.block_until_ready(fwd_bf16(x, w_blk_bf16))

    # f32 compute path: tight check of the block-real kernel algebra.
    plan_f32 = plan_spectral_conv1d(B, C_in, C_out, N, modes1, jnp.float32)
    w_blk_f32 = jax.block_until_ready(prepare_block_weights(weights1, plan_f32))
    fwd_f32 = jax.jit(make_spectral_conv1d(plan_f32))
    out_f32 = jax.block_until_ready(fwd_f32(x, w_blk_f32))

    # Pure-JAX reference of the PyTorch forward for a correctness check.
    x_ft_ref = jnp.fft.rfft(x, axis=-1)
    mix_ref = jnp.einsum("bix,iox->box", x_ft_ref[:, :, :modes1], weights1)
    out_ft_ref = jnp.zeros((B, C_out, N // 2 + 1), dtype=jnp.complex64)
    out_ft_ref = out_ft_ref.at[:, :, :modes1].set(mix_ref)
    out_ref = jnp.fft.irfft(out_ft_ref, n=N, axis=-1)

    assert out.shape == (B, C_out, N)
    assert plan_bf16.n_steps >= 2          # multi-step grid path is exercised
    # f32-input path: tight check of the block-real kernel algebra.
    assert jnp.allclose(out_f32, out_ref, atol=1e-5, rtol=1e-5), "f32 mismatch"
    # bf16 matmul inputs (f32 accumulation): relaxed tolerance.
    assert jnp.allclose(out, out_ref, atol=2e-2, rtol=2e-2), "bf16 mismatch"
    print("KERNEL_OK")
</pallas_src>

<mosaic_0001>
module attributes {stable_mosaic.version = 11 : i64} {
  func.func @_spectral_mix_kernel(%arg0: i32, %arg1: memref<3x16x16xbf16, #tpu.memory_space<vmem>>, %arg2: memref<3x16x128xbf16, #tpu.memory_space<vmem>>, %arg3: memref<3x16x128xf32, #tpu.memory_space<vmem>>) attributes {dimension_semantics = [#tpu.dimension_semantics<parallel>], iteration_bounds = array<i64: 2>, scalar_prefetch = 0 : i64, scratch_operands = 0 : i64, tpu.core_type = #tpu.core_type<tc>, window_params = [{transform_indices = @transform_0, window_bounds = array<i64: 3, 16, 16>}, {transform_indices = @transform_1, window_bounds = array<i64: 3, 16, 128>}, {transform_indices = @transform_2, window_bounds = array<i64: 3, 16, 128>}]} {
    %c0 = arith.constant 0 : index
    %c0_0 = arith.constant 0 : index
    %c0_1 = arith.constant 0 : index
    %0 = vector.load %arg1[%c0, %c0_0, %c0_1] : memref<3x16x16xbf16, #tpu.memory_space<vmem>>, vector<3x16x16xbf16>
    %c0_2 = arith.constant 0 : index
    %c0_3 = arith.constant 0 : index
    %c0_4 = arith.constant 0 : index
    %1 = vector.load %arg2[%c0_2, %c0_3, %c0_4] : memref<3x16x128xbf16, #tpu.memory_space<vmem>>, vector<3x16x128xbf16>
    "tpu.trace_start"() <{level = 10 : i32, message = "mbk,mkn->mbn"}> : () -> ()
    %cst = arith.constant dense<0.000000e+00> : vector<3x16x128xf32>
    %2 = tpu.matmul %0, %1, %cst {dimension_numbers = #tpu.dot_dimension_numbers<[2], [1], [1], [2], [0, 0, 0, 1, 1, 2], [0], [0]>} : vector<3x16x16xbf16>, vector<3x16x128xbf16>, vector<3x16x128xf32> -> vector<3x16x128xf32>
    "tpu.trace_stop"() : () -> ()
    %c0_5 = arith.constant 0 : index
    %c0_6 = arith.constant 0 : index
    %c0_7 = arith.constant 0 : index
    %3 = vector.load %arg3[%c0_5, %c0_6, %c0_7] : memref<3x16x128xf32, #tpu.memory_space<vmem>>, vector<3x16x128xf32>
    tpu.vector_store %arg3[%c0_5, %c0_6, %c0_7], %2 {strides = array<i32>} : memref<3x16x128xf32, #tpu.memory_space<vmem>>, vector<3x16x128xf32>,
    return
  }
  func.func @transform_0(%arg0: i32) -> (i32, i32, i32) {
    %c0_i32 = arith.constant 0 : i32
    %c0_i32_0 = arith.constant 0 : i32
    %c0_i32_1 = arith.constant 0 : i32
    return %arg0, %c0_i32, %c0_i32_0 : i32, i32, i32
  }
  func.func @transform_1(%arg0: i32) -> (i32, i32, i32) {
    %c0_i32 = arith.constant 0 : i32
    %c0_i32_0 = arith.constant 0 : i32
    %c0_i32_1 = arith.constant 0 : i32
    return %arg0, %c0_i32, %c0_i32_0 : i32, i32, i32
  }
  func.func @transform_2(%arg0: i32) -> (i32, i32, i32) {
    %c0_i32 = arith.constant 0 : i32
    %c0_i32_0 = arith.constant 0 : i32
    %c0_i32_1 = arith.constant 0 : i32
    return %arg0, %c0_i32, %c0_i32_0 : i32, i32, i32
  }
}

</mosaic_0001>

<llo_original>
// kernel: reverse.1
$region0: #{reverse.1}
  #allocation0 [shape = 's32[1]{0}', space=sflag, size = 0x4, scoped, tag = 'scoped memory for reverse.1']
  %s0 = inlined_call_operand.vmem [shape: f32[2,4,7], index: 0, kind: input, shape index: {}]
  %s1 = inlined_call_operand.vmem [shape: f32[2,4,7], index: 1, kind: output, shape index: {}]
  %s2 = scalar_lea.vmem %s0, 12
  %v3 = vld [vmem:[%s2] sm:$0x3]
  %4 = vst [vmem:[%s1] sm:$0x3] %v3
  %s5 = scalar_lea.vmem %s0, 10
  %v6 = vld [vmem:[%s5] sm:$0x3]
  %s7 = scalar_lea.vmem %s1, 2
  %8 = vst [vmem:[%s7] sm:$0x3] %v6
  %s9 = scalar_lea.vmem %s0, 8
  %v10 = vld [vmem:[%s9] sm:$0x3]
  %s11 = scalar_lea.vmem %s1, 4
  %12 = vst [vmem:[%s11] sm:$0x3] %v10
  %s13 = scalar_lea.vmem %s0, 6
  %v14 = vld [vmem:[%s13] sm:$0x3]
  %s15 = scalar_lea.vmem %s1, 6
  %16 = vst [vmem:[%s15] sm:$0x3] %v14
  %s17 = scalar_lea.vmem %s0, 4
  %v18 = vld [vmem:[%s17] sm:$0x3]
  %s19 = scalar_lea.vmem %s1, 8
  %20 = vst [vmem:[%s19] sm:$0x3] %v18
  %s21 = scalar_lea.vmem %s0, 2
  %v22 = vld [vmem:[%s21] sm:$0x3]
  %s23 = scalar_lea.vmem %s1, 10
  %24 = vst [vmem:[%s23] sm:$0x3] %v22
  %v25 = vld [vmem:[%s0] sm:$0x3]
  %s26 = scalar_lea.vmem %s1, 12
  %27 = vst [vmem:[%s26] sm:$0x3] %v25

// kernel: forward.1
$region0: #{forward.1}
  #allocation0 [shape = 'u32[]', space=smem, size = 0x4, offset = 0x4, fixed_abs, tag = 'smem constant byte address 0x4 - core index']
  #allocation1 [shape = 'u32[144,128]{1,0:T(1,128)}', space=vmem, size = 0x12000, scoped, tag = 'internal scratch']
  %s0 = inlined_call_operand.vmem [shape: bf16[6,16,16], index: 0, kind: input, shape index: {}]
  %s1 = inlined_call_operand.vmem [shape: bf16[6,16,128], index: 1, kind: input, shape index: {}]
  %s2 = inlined_call_operand.vmem [shape: f32[6,16,128], index: 2, kind: output, shape index: {}]
  %s3 = sld [smem:[#allocation0]]
  $region41: #{forward.1} parent=0
    _
  %s5 = ssub.s32 1, %s3
  %s6 = scalar_select 0, %s5, %s3
  loop: start=0, step=1, limit=4
  $region2: #{forward.1} parent=0 // loop_pre_header
    _
  $region3: #{forward.1} parent=0 // loop_header
    %s8 = sphi 0, %s12
    %p9 = scmp.ge.s32.totalorder %s8, 4
    %s18 = sphi 0, %s20
    %s21 = sphi 0, %s18
    %s22 = sphi 0, %s21
    %s38 = sphi 0, %s22
    %s44 = sphi 0, %s46
    %s47 = sphi 0, %s44
    %s48 = sphi 0, %s47
    %s64 = sphi 0, %s48
    %s70 = sphi 0, %s72
    %s73 = sphi 0, %s70
    %s74 = sphi 0, %s73
    %s90 = sphi 0, %s74
  $region4: #{forward.1} parent=0 // loop_header_branch
    %11 = sbr.rel (%p9) target = $region8
  $region5: #{forward.1} parent=0 // loop_body
    %s13 = ssub.s32 %s8, 1
    %s14 = ssub.s32 %s8, 2
    %s15 = sadd.s32 %s8, 1
    %s16 = ssub.s32 %s8, %s15
    %p17 = scmp.eq.s32.totalorder %s16, 0
    %s19 = sadd.s32 %s18, 1
    %s20 = scalar_select %p17, %s18, %s19
    %p23 = pneg %p17
    %p24 = scmp.eq.s32.totalorder %s8, 1
    %p25 = por %p23, %p24
    %p26 = scmp.ne.s32.totalorder %s18, %s21
    %p27 = scmp.eq.s32.totalorder %s8, 0
    %p28 = por %p26, %p27
    %p29 = scmp.ne.s32.totalorder %s18, %s21
    %p30 = scmp.eq.s32.totalorder %s13, 1
    %p31 = por %p29, %p30
    %p32 = scmp.ne.s32.totalorder %s21, %s22
    %p33 = scmp.eq.s32.totalorder %s13, 0
    %p34 = por %p32, %p33
    %p35 = scmp.ne.s32.totalorder %s21, %s22
    %p36 = scmp.eq.s32.totalorder %s14, 1
    %p37 = por %p35, %p36
    %p39 = scmp.ne.s32.totalorder %s22, %s38
    %p40 = scmp.eq.s32.totalorder %s14, 0
    %p41 = por %p39, %p40
    %s42 = ssub.s32 %s8, %s15
    %p43 = scmp.eq.s32.totalorder %s42, 0
    %s45 = sadd.s32 %s44, 1
    %s46 = scalar_select %p43, %s44, %s45
    %p49 = pneg %p43
    %p50 = scmp.eq.s32.totalorder %s8, 1
    %p51 = por %p49, %p50
    %p52 = scmp.ne.s32.totalorder %s44, %s47
    %p53 = scmp.eq.s32.totalorder %s8, 0
    %p54 = por %p52, %p53
    %p55 = scmp.ne.s32.totalorder %s44, %s47
    %p56 = scmp.eq.s32.totalorder %s13, 1
    %p57 = por %p55, %p56
    %p58 = scmp.ne.s32.totalorder %s47, %s48
    %p59 = scmp.eq.s32.totalorder %s13, 0
    %p60 = por %p58, %p59
    %p61 = scmp.ne.s32.totalorder %s47, %s48
    %p62 = scmp.eq.s32.totalorder %s14, 1
    %p63 = por %p61, %p62
    %p65 = scmp.ne.s32.totalorder %s48, %s64
    %p66 = scmp.eq.s32.totalorder %s14, 0
    %p67 = por %p65, %p66
    %s68 = ssub.s32 %s8, %s15
    %p69 = scmp.eq.s32.totalorder %s68, 0
    %s71 = sadd.s32 %s70, 1
    %s72 = scalar_select %p69, %s70, %s71
    %p75 = pneg %p69
    %p76 = scmp.eq.s32.totalorder %s8, 1
    %p77 = por %p75, %p76
    %p78 = scmp.ne.s32.totalorder %s70, %s73
    %p79 = scmp.eq.s32.totalorder %s8, 0
    %p80 = por %p78, %p79
    %p81 = scmp.ne.s32.totalorder %s70, %s73
    %p82 = scmp.eq.s32.totalorder %s13, 1
    %p83 = por %p81, %p82
    %p84 = scmp.ne.s32.totalorder %s73, %s74
    %p85 = scmp.eq.s32.totalorder %s13, 0
    %p86 = por %p84, %p85
    %p87 = scmp.ne.s32.totalorder %s73, %s74
    %p88 = scmp.eq.s32.totalorder %s14, 1
    %p89 = por %p87, %p88
    %p91 = scmp.ne.s32.totalorder %s74, %s90
    %p92 = scmp.eq.s32.totalorder %s14, 0
    %p93 = por %p91, %p92
    %p94 = scmp.le.s32.totalorder 1, %s8
    %p95 = scmp.lt.s32.totalorder %s8, 3
    %p96 = pnand %p94, %p95
    %p97 = pneg %p96
    // Predicated region
    $region9: #{forward.1} parent=5 // pred_check
      _
    $region10: #{forward.1} parent=5 // pred_check_branch
      %99 = sbr.rel (%p96) target = $region12
    $region11: #{forward.1} parent=5 // pred_region
      %s100 = ssub.s32 %s8, 1
    $region12: #{forward.1} parent=5 // pred_fallthru
      _
    %p101 = scmp.lt.s32.totalorder %s8, 2
    // Predicated region
    $region13: #{forward.1} parent=5 // pred_check
      %p102 = pneg %p101
    $region14: #{forward.1} parent=5 // pred_check_branch
      %104 = sbr.rel (%p102) target = $region16
    $region15: #{forward.1} parent=5 // pred_region
      // Predicated region
      $region17: #{forward.1} parent=15 // pred_check
        %p105 = pneg %p28
      $region18: #{forward.1} parent=15 // pred_check_branch
        %107 = sbr.rel (%p105) target = $region20
      $region19: #{forward.1} parent=15 // pred_region
        %s108 = smul.u32 3, %s8
        %p109 = scmp.lt.s32.totalorder %s108, 5
        %s110 = scalar_select %p109, %s108, 5
        %s111 = smul.addr %s110, 2
        %s112 = smul.addr %s111, 4
        %s113 = scalar_lea.vmem %s0, %s112
        %s114 = smul.u32 3, %s8
      $region20: #{forward.1} parent=15 // pred_fallthru
        _
      // Predicated region
      $region21: #{forward.1} parent=15 // pred_check
        %p115 = pneg %p54
      $region22: #{forward.1} parent=15 // pred_check_branch
        %117 = sbr.rel (%p115) target = $region24
      $region23: #{forward.1} parent=15 // pred_region
        %s118 = smul.u32 3, %s8
        %p119 = scmp.lt.s32.totalorder %s118, 5
        %s120 = scalar_select %p119, %s118, 5
        %s121 = smul.addr %s120, 2
        %s122 = smul.addr %s121, 4
        %s123 = scalar_lea.vmem %s1, %s122
        %s124 = smul.u32 3, %s8
      $region24: #{forward.1} parent=15 // pred_fallthru
        _
    $region16: #{forward.1} parent=5 // pred_fallthru
      _
    %p125 = scmp.le.s32.totalorder 1, %s8
    %p126 = scmp.lt.s32.totalorder %s8, 3
    %p127 = pnand %p125, %p126
    %p128 = pneg %p127
    // Predicated region
    $region25: #{forward.1} parent=5 // pred_check
      _
    $region26: #{forward.1} parent=5 // pred_check_branch
      %130 = sbr.rel (%p127) target = $region28
    $region27: #{forward.1} parent=5 // pred_region
      %s131 = ssub.s32 %s8, 1
      %s132 = smul.u32 3, %s13
      %p133 = scmp.lt.s32.totalorder %s132, 5
      %s134 = scalar_select %p133, %s132, 5
      %s135 = smul.addr %s134, 2
      %s136 = smul.addr %s135, 4
      %s137 = scalar_lea.vmem %s0, %s136
      %p138 = pneg %p34
      %p139 = pneg %p31
      %s140 = smul.u32 3, %s13
      %p141 = scmp.lt.s32.totalorder %s140, 5
      %s142 = scalar_select %p141, %s140, 5
      %s143 = smul.addr %s142, 2
      %s144 = smul.addr %s143, 4
      %s145 = scalar_lea.vmem %s1, %s144
      %p146 = pneg %p60
      %p147 = pneg %p57
      %p148 = pneg %p86
      %p149 = pneg %p83
      %s150 = smul.u32 3, %s13
      %p151 = scmp.lt.s32.totalorder %s150, 5
      %s152 = scalar_select %p151, %s150, 5
      %s153 = smul.addr %s152, 2
      %s154 = smul.addr %s153, 8
      %s155 = scalar_lea.vmem %s2, %s154
      %s156 = smul.u32 3, %s13
      %p157 = scmp.lt.s32.totalorder %s156, 5
      %s158 = scalar_select %p157, %s156, 5
      %s159 = smul.addr %s158, 2
      %s160 = smul.addr %s159, 4
      %s161 = scalar_lea.vmem %s0, %s160
      %s162 = smul.u32 3, %s13
      %s163 = smul.u32 3, %s13
      %p164 = scmp.lt.s32.totalorder %s163, 5
      %s165 = scalar_select %p164, %s163, 5
      %s166 = smul.addr %s165, 2
      %s167 = smul.addr %s166, 4
      %s168 = scalar_lea.vmem %s1, %s167
      %s169 = smul.u32 3, %s13
      %s170 = smul.u32 3, %s13
      %p171 = scmp.lt.s32.totalorder %s170, 5
      %s172 = scalar_select %p171, %s170, 5
      %s173 = smul.addr %s172, 2
      %s174 = smul.addr %s173, 8
      %s175 = scalar_lea.vmem %s2, %s174
      %s176 = smul.u32 3, %s13
      %v178 = vld [vmem:[%s161] sm:$0xf]
      %v179 = vld [vmem:[%s161 + $0x4] sm:$0xf]
      %v180 = vld [vmem:[%s161 + $0x8] sm:$0xf]
      %v181 = vld [vmem:[%s161 + $0xc] sm:$0xf]
      %v182 = vld [vmem:[%s161 + $0x10] sm:$0xf]
      %v183 = vld [vmem:[%s161 + $0x14] sm:$0xf]
      %v184 = vld [vmem:[%s168] sm:$0xf]
      %v185 = vld [vmem:[%s168 + $0x4] sm:$0xf]
      %v186 = vld [vmem:[%s168 + $0x8] sm:$0xf]
      %v187 = vld [vmem:[%s168 + $0xc] sm:$0xf]
      %v188 = vld [vmem:[%s168 + $0x10] sm:$0xf]
      %v189 = vld [vmem:[%s168 + $0x14] sm:$0xf]
      %v192 = vunpack.c.l.b16 %v178
      %v193 = vunpack.c.l.b16 %v179
      %v194 = vpack.c.b16 %v193, %v192
      %v197 = vunpack.c.l.b16 %v184
      %v198 = vunpack.c.l.b16 %v185
      %v199 = vpack.c.b16 %v198, %v197
      %vm201 = vcmask 130048
      %v203 = vsel %vm201, %v194, 0
      %205 = vmatprep.subr.bf16.mxu0 0
      %206 = vmatpush1.bf16.msra.mxu0 %v199
      %207 = vmatprep.subr.bf16.mxu0 0
      %208 = vmatpush1.bf16.msra.mxu0 0
      %209 = vmatprep.subr.bf16.mxu0 0
      %210 = vmatpush1.bf16.msra.mxu0 0
      %211 = vmatprep.subr.bf16.mxu0 0
      %212 = vmatpush1.bf16.msra.mxu0 0
      %213 = vmatprep.subr.bf16.mxu0 0
      %214 = vmatpush1.bf16.msra.mxu0 0
      %215 = vmatprep.subr.bf16.mxu0 0
      %216 = vmatpush1.bf16.msra.mxu0 0
      %217 = vmatprep.subr.bf16.mxu0 0
      %218 = vmatpush1.bf16.msra.mxu0 0
      %219 = vmatprep.subr.bf16.mxu0 0
      %220 = vmatpush1.bf16.msra.mxu0 0
      %221 = vmatprep.subr.bf16.mxu0 0
      %222 = vmatpush1.bf16.msra.mxu0 0
      %223 = vmatprep.subr.bf16.mxu0 0
      %224 = vmatpush1.bf16.msra.mxu0 0
      %225 = vmatprep.subr.bf16.mxu0 0
      %226 = vmatpush1.bf16.msra.mxu0 0
      %227 = vmatprep.subr.bf16.mxu0 0
      %228 = vmatpush1.bf16.msra.mxu0 0
      %229 = vmatprep.subr.bf16.mxu0 0
      %230 = vmatpush1.bf16.msra.mxu0 0
      %231 = vmatprep.subr.bf16.mxu0 0
      %232 = vmatpush1.bf16.msra.mxu0 0
      %233 = vmatprep.subr.bf16.mxu0 0
      %234 = vmatpush1.bf16.msra.mxu0 0
      %235 = vmatprep.subr.bf16.mxu0 0
      %236 = vmatpush1.bf16.msra.mxu0 0
      %237 = vmatprep.mubr.bf16.mxu0 0
      %238 = vmatmul.mubr.bf16.gmra.mrb[0].mxu0 %v203
      %v239 = vpop.f32.mrb[0].mxu0
      %v240 = vadd.f32 0.0, %v239
      %v241 = vpop.f32.mrb[0].mxu0
      %v242 = vpop.f32.mrb[0].mxu0
      %v243 = vadd.f32 0.0, %v242
      %v244 = vpop.f32.mrb[0].mxu0
      %245 = vdwg.mxu0
      %v248 = vunpack.c.l.b16 %v180
      %v249 = vunpack.c.l.b16 %v181
      %v250 = vpack.c.b16 %v249, %v248
      %v253 = vunpack.c.l.b16 %v186
      %v254 = vunpack.c.l.b16 %v187
      %v255 = vpack.c.b16 %v254, %v253
      %v258 = vsel %vm201, %v250, 0
      %260 = vmatprep.subr.bf16.mxu0 0
      %261 = vmatpush1.bf16.msra.mxu0 %v255
      %262 = vmatprep.subr.bf16.mxu0 0
      %263 = vmatpush1.bf16.msra.mxu0 0
      %264 = vmatprep.subr.bf16.mxu0 0
      %265 = vmatpush1.bf16.msra.mxu0 0
      %266 = vmatprep.subr.bf16.mxu0 0
      %267 = vmatpush1.bf16.msra.mxu0 0
      %268 = vmatprep.subr.bf16.mxu0 0
      %269 = vmatpush1.bf16.msra.mxu0 0
      %270 = vmatprep.subr.bf16.mxu0 0
      %271 = vmatpush1.bf16.msra.mxu0 0
      %272 = vmatprep.subr.bf16.mxu0 0
      %273 = vmatpush1.bf16.msra.mxu0 0
      %274 = vmatprep.subr.bf16.mxu0 0
      %275 = vmatpush1.bf16.msra.mxu0 0
      %276 = vmatprep.subr.bf16.mxu0 0
      %277 = vmatpush1.bf16.msra.mxu0 0
      %278 = vmatprep.subr.bf16.mxu0 0
      %279 = vmatpush1.bf16.msra.mxu0 0
      %280 = vmatprep.subr.bf16.mxu0 0
      %281 = vmatpush1.bf16.msra.mxu0 0
      %282 = vmatprep.subr.bf16.mxu0 0
      %283 = vmatpush1.bf16.msra.mxu0 0
      %284 = vmatprep.subr.bf16.mxu0 0
      %285 = vmatpush1.bf16.msra.mxu0 0
      %286 = vmatprep.subr.bf16.mxu0 0
      %287 = vmatpush1.bf16.msra.mxu0 0
      %288 = vmatprep.subr.bf16.mxu0 0
      %289 = vmatpush1.bf16.msra.mxu0 0
      %290 = vmatprep.subr.bf16.mxu0 0
      %291 = vmatpush1.bf16.msra.mxu0 0
      %292 = vmatprep.mubr.bf16.mxu0 0
      %293 = vmatmul.mubr.bf16.gmra.mrb[0].mxu0 %v258
      %v294 = vpop.f32.mrb[0].mxu0
      %v295 = vadd.f32 0.0, %v294
      %v296 = vpop.f32.mrb[0].mxu0
      %v297 = vpop.f32.mrb[0].mxu0
      %v298 = vadd.f32 0.0, %v297
      %v299 = vpop.f32.mrb[0].mxu0
      %300 = vdwg.mxu0
      %v303 = vunpack.c.l.b16 %v182
      %v304 = vunpack.c.l.b16 %v183
      %v305 = vpack.c.b16 %v304, %v303
      %v308 = vunpack.c.l.b16 %v188
      %v309 = vunpack.c.l.b16 %v189
      %v310 = vpack.c.b16 %v309, %v308
      %v313 = vsel %vm201, %v305, 0
      %315 = vmatprep.subr.bf16.mxu0 0
      %316 = vmatpush1.bf16.msra.mxu0 %v310
      %317 = vmatprep.subr.bf16.mxu0 0
      %318 = vmatpush1.bf16.msra.mxu0 0
      %319 = vmatprep.subr.bf16.mxu0 0
      %320 = vmatpush1.bf16.msra.mxu0 0
      %321 = vmatprep.subr.bf16.mxu0 0
      %322 = vmatpush1.bf16.msra.mxu0 0
      %323 = vmatprep.subr.bf16.mxu0 0
      %324 = vmatpush1.bf16.msra.mxu0 0
      %325 = vmatprep.subr.bf16.mxu0 0
      %326 = vmatpush1.bf16.msra.mxu0 0
      %327 = vmatprep.subr.bf16.mxu0 0
      %328 = vmatpush1.bf16.msra.mxu0 0
      %329 = vmatprep.subr.bf16.mxu0 0
      %330 = vmatpush1.bf16.msra.mxu0 0
      %331 = vmatprep.subr.bf16.mxu0 0
      %332 = vmatpush1.bf16.msra.mxu0 0
      %333 = vmatprep.subr.bf16.mxu0 0
      %334 = vmatpush1.bf16.msra.mxu0 0
      %335 = vmatprep.subr.bf16.mxu0 0
      %336 = vmatpush1.bf16.msra.mxu0 0
      %337 = vmatprep.subr.bf16.mxu0 0
      %338 = vmatpush1.bf16.msra.mxu0 0
      %339 = vmatprep.subr.bf16.mxu0 0
      %340 = vmatpush1.bf16.msra.mxu0 0
      %341 = vmatprep.subr.bf16.mxu0 0
      %342 = vmatpush1.bf16.msra.mxu0 0
      %343 = vmatprep.subr.bf16.mxu0 0
      %344 = vmatpush1.bf16.msra.mxu0 0
      %345 = vmatprep.subr.bf16.mxu0 0
      %346 = vmatpush1.bf16.msra.mxu0 0
      %347 = vmatprep.mubr.bf16.mxu0 0
      %348 = vmatmul.mubr.bf16.gmra.mrb[0].mxu0 %v313
      %v349 = vpop.f32.mrb[0].mxu0
      %v350 = vadd.f32 0.0, %v349
      %v351 = vpop.f32.mrb[0].mxu0
      %v352 = vpop.f32.mrb[0].mxu0
      %v353 = vadd.f32 0.0, %v352
      %v354 = vpop.f32.mrb[0].mxu0
      %355 = vdwg.mxu0
      %356 = vst [vmem:[%s175] sm:$0xff] %v240
      %357 = vst [vmem:[%s175 + $0x8] sm:$0xff] %v243
      %358 = vst [vmem:[%s175 + $0x10] sm:$0xff] %v295
      %359 = vst [vmem:[%s175 + $0x18] sm:$0xff] %v298
      %360 = vst [vmem:[%s175 + $0x20] sm:$0xff] %v350
      %361 = vst [vmem:[%s175 + $0x28] sm:$0xff] %v353
      %s362 = smul.u32 3, %s13
      %p363 = scmp.lt.s32.totalorder %s362, 5
      %s364 = scalar_select %p363, %s362, 5
      %s365 = smul.addr %s364, 2
      %s366 = smul.addr %s365, 8
      %s367 = scalar_lea.vmem %s2, %s366
      // Predicated region
      $region29: #{forward.1} parent=27 // pred_check
        %p368 = pneg %p83
      $region30: #{forward.1} parent=27 // pred_check_branch
        %370 = sbr.rel (%p368) target = $region32
      $region31: #{forward.1} parent=27 // pred_region
        %s371 = smul.u32 3, %s13
      $region32: #{forward.1} parent=27 // pred_fallthru
        _
    $region28: #{forward.1} parent=5 // pred_fallthru
      _
    %p372 = scmp.le.s32.totalorder 2, %s8
    // Predicated region
    $region33: #{forward.1} parent=5 // pred_check
      %p373 = pneg %p372
    $region34: #{forward.1} parent=5 // pred_check_branch
      %375 = sbr.rel (%p373) target = $region36
    $region35: #{forward.1} parent=5 // pred_region
      %s376 = ssub.s32 %s8, 2
      // Predicated region
      $region37: #{forward.1} parent=35 // pred_check
        %p377 = pneg %p89
      $region38: #{forward.1} parent=35 // pred_check_branch
        %379 = sbr.rel (%p377) target = $region40
      $region39: #{forward.1} parent=35 // pred_region
        %s380 = smul.u32 3, %s14
        %p381 = scmp.lt.s32.totalorder %s380, 5
        %s382 = scalar_select %p381, %s380, 5
        %s383 = smul.addr %s382, 2
        %s384 = smul.addr %s383, 8
        %s385 = scalar_lea.vmem %s2, %s384
      $region40: #{forward.1} parent=35 // pred_fallthru
        _
    $region36: #{forward.1} parent=5 // pred_fallthru
      _
  $region6: #{forward.1} parent=0 // loop_footer
    %s12 = sadd.s32 1, %s8
  $region7: #{forward.1} parent=0 // loop_footer_branch
    %7 = sbr.rel target = $region3
  $region8: #{forward.1} parent=0 // loop_exit
    _

</llo_original>
